<compile_context>
chip_gen: v5e
topology: v5e:2x2
jax: 0.10.0
libtpu: 0.0.40
codegen_flags: <defaults>
</compile_context>

<pallas_src>
import functools

import jax
import jax.numpy as jnp
from jax.experimental import pallas as pl
from jax.experimental.pallas import tpu as pltpu


def _focal_loss_kernel(x_ref, t_ref, w_ref, out_ref, acc_ref, *, gamma, n_rows, tile):
    c = pl.program_id(0)
    i = pl.program_id(1)
    steps = pl.num_programs(1)

    @pl.when(i == 0)
    def _():
        acc_ref[...] = jnp.zeros_like(acc_ref)

    x = x_ref[...].astype(jnp.float32)            # (tile, C); lane padding handled by Mosaic
    t = t_ref[...]                                # (tile, 1) int32 (ignored rows -> 0)
    w = w_ref[...]                                # (tile, 1) f32   (ignored rows -> 0)

    # row validity in this block: handles the ragged tail and the clamped
    # (duplicated) blocks of the last core -- their rows all get index >= n_rows.
    row0 = (c * steps + i) * tile
    rid = row0 + jax.lax.broadcasted_iota(jnp.int32, (tile, 1), 0)
    row_ok = rid < n_rows

    # numerically stable log_softmax along the class (lane) axis
    m = jnp.max(x, axis=-1, keepdims=True)
    z = x - m
    lse = jnp.log(jnp.sum(jnp.exp(z), axis=-1, keepdims=True))

    # gather z[row, target[row]] via one-hot select (no dynamic gather on TPU)
    col = jax.lax.broadcasted_iota(jnp.int32, x.shape, 1)
    zt = jnp.sum(jnp.where(col == t, z, 0.0), axis=-1, keepdims=True)
    logpt = zt - lse                              # (tile, 1)
    pt = jnp.exp(logpt)

    # focal modulation specialized at trace time (gamma is a static Python float)
    g = float(gamma)
    if g == 0.0:
        loss = -logpt
    elif g == float(int(g)) and 1.0 <= g <= 4.0:
        omp = 1.0 - pt
        f = omp
        for _ in range(int(g) - 1):
            f = f * omp
        loss = -f * logpt
    else:
        loss = -((1.0 - pt) ** g) * logpt

    # fused ignore-mask * alpha weight; row_ok zeroes garbage / out-of-range rows
    # (jnp.where, not multiply, so NaN garbage in padded rows cannot propagate).
    contrib = jnp.where(row_ok, loss * w, 0.0)    # (tile, 1)
    acc_ref[...] += jnp.sum(contrib, keepdims=True)

    @pl.when(i == steps - 1)
    def _():
        out_ref[...] = jnp.broadcast_to(acc_ref[...][None], out_ref.shape)


def _default_num_cores():
    # v7x has 2 TensorCores per chip; v5e/v6e have 1 (a 2-way split there buys
    # nothing and only adds a second output block + host-side reduce).
    try:
        kind = jax.devices()[0].device_kind.lower()
        if "v7" in kind or "tpu7" in kind:
            return 2
    except Exception:
        pass
    return 1


def focal_loss(logits, target, *, gamma=0.0, alpha=None, ignore_index=-100,
               size_average=True, tile_n=8192, num_cores=None):
    """Pallas implementation of FocalLoss.forward.

    torch.masked_select + gather is replaced by mask-and-reduce, which is
    numerically identical for the final mean / sum over non-ignored elements.
    """
    num_label = logits.shape[-1]
    x = logits.reshape(-1, num_label)             # native dtype; no pad, no upcast
    t = target.reshape(-1).astype(jnp.int32)
    n = x.shape[0]
    itemsize = jnp.dtype(x.dtype).itemsize

    # ---- fuse ignore-mask and alpha into one per-row weight (hoisted to JAX) ----
    mask = t != ignore_index
    t_safe = jnp.where(mask, t, 0)
    if alpha is not None:
        if isinstance(alpha, (float, int)):
            table = jnp.array([alpha, 1.0 - alpha], jnp.float32)
        else:
            table = jnp.asarray(alpha, jnp.float32).reshape(-1)
        if table.shape[0] < num_label:
            # TODO(synk): classes beyond the alpha table silently get weight 0
            # (PyTorch's gather would raise); matches the scalar-alpha binary use.
            table = jnp.zeros((num_label,), jnp.float32).at[:table.shape[0]].set(table)
        per_row = table[t_safe]
    else:
        per_row = jnp.ones((n,), jnp.float32)
    w = jnp.where(mask, per_row, 0.0)[:, None]            # (N, 1) f32
    t2 = t_safe[:, None]                                  # (N, 1) int32
    cnt = jnp.sum(mask.astype(jnp.float32))               # non-ignored count (wrapper side)

    # ---- tile selection: ~4 MiB logits blocks, VMEM-accounted for v7x (64 MiB) ----
    c_phys = ((num_label + 127) // 128) * 128             # lane-padded class width in VMEM
    bytes_per_row_hbm = max(1, num_label * itemsize)
    # double-buffered VMEM per row: x block + (tile,1) int32 target + (tile,1) f32
    # weight, both physically lane-padded to (tile,128).
    bytes_per_row_vmem = 2 * (c_phys * itemsize + 128 * 4 + 128 * 4)
    target_block_bytes = 4 << 20
    vmem_stream_budget = 32 << 20
    tile = min(int(tile_n),
               max(8, target_block_bytes // bytes_per_row_hbm),
               max(8, vmem_stream_budget // bytes_per_row_vmem))
    tile = min(tile, ((n + 7) // 8) * 8)
    tile = max(8, (tile // 8) * 8)

    num_blocks = pl.cdiv(n, tile)
    if num_cores is None:
        num_cores = _default_num_cores()
    num_cores = max(1, min(int(num_cores), num_blocks))
    steps_per_core = pl.cdiv(num_blocks, num_cores)
    last_block = num_blocks - 1

    vmem_limit = int(min(max(tile * bytes_per_row_vmem + (4 << 20), 16 << 20), 48 << 20))

    kernel = functools.partial(_focal_loss_kernel, gamma=float(gamma),
                               n_rows=n, tile=tile)

    def row_map(c, i):
        # Clamp so the overshoot blocks of the last core never DMA past the end
        # of the array (their rows are masked to zero via n_rows in the kernel).
        return (jnp.minimum(c * steps_per_core + i, last_block), 0)

    out_map = lambda c, i: (c, 0, 0)

    out = pl.pallas_call(
        kernel,
        out_shape=jax.ShapeDtypeStruct((num_cores, 8, 128), jnp.float32),
        grid_spec=pltpu.PrefetchScalarGridSpec(
            num_scalar_prefetch=0,
            grid=(num_cores, steps_per_core),
            in_specs=[pl.BlockSpec((tile, num_label), row_map),
                      pl.BlockSpec((tile, 1), row_map),
                      pl.BlockSpec((tile, 1), row_map)],
            out_specs=pl.BlockSpec((1, 8, 128), out_map),
            scratch_shapes=[pltpu.VMEM((1, 1), jnp.float32)]),
        compiler_params=pltpu.CompilerParams(
            # TODO(synk): on v7x verify "parallel" actually shards the leading
            # axis across both TensorCores; switch to pltpu.CORE_PARALLEL if not.
            dimension_semantics=("parallel", "arbitrary"),
            vmem_limit_bytes=vmem_limit),
    )(x, t2, w)

    loss_sum = jnp.sum(out[:, 0, 0])
    if size_average:
        # TODO(synk): PyTorch's mean over an empty selection is NaN; this
        # returns 0 in that degenerate all-ignored case.
        return loss_sum / jnp.maximum(cnt, 1.0)
    return loss_sum


def _focal_loss_ref(logits, target, gamma, alpha_vec, ignore_index, size_average):
    """Pure-JAX reference mirroring the PyTorch forward."""
    num_label = logits.shape[-1]
    x = logits.reshape(-1, num_label).astype(jnp.float32)
    t = target.reshape(-1)
    mask = t != ignore_index
    t_safe = jnp.where(mask, t, 0)
    logp = jax.nn.log_softmax(x, axis=-1)
    logpt = jnp.take_along_axis(logp, t_safe[:, None], axis=1)[:, 0]
    pt = jnp.exp(logpt)
    at = alpha_vec[t_safe]
    logpt = logpt * at
    loss = -1.0 * (1.0 - pt) ** gamma * logpt
    loss = jnp.where(mask, loss, 0.0)
    if size_average:
        return jnp.sum(loss) / jnp.maximum(jnp.sum(mask), 1)
    return jnp.sum(loss)


if __name__ == "__main__":
    batch, seq, num_label = 2, 8, 32
    gamma = 2.0
    ignore_index = -100

    key = jax.random.PRNGKey(0)
    k_logits, k_target, k_logits3, k_target3 = jax.random.split(key, 4)
    logits = jax.random.normal(k_logits, (batch, seq, num_label), jnp.float32)
    target = jax.random.randint(k_target, (batch, seq), 0, num_label, jnp.int32)
    target = target.at[0, 0].set(ignore_index)
    target = target.at[1, 3].set(ignore_index)

    # deterministic per-class alpha weights (shape = [num_label])
    alpha = [float(0.5 + 0.01 * i) for i in range(num_label)]

    out = focal_loss(logits, target, gamma=gamma, alpha=alpha,
                     ignore_index=ignore_index, size_average=True)
    out = jax.block_until_ready(out)
    ref = _focal_loss_ref(logits, target, gamma,
                          jnp.asarray(alpha, jnp.float32),
                          ignore_index, size_average=True)
    assert jnp.allclose(out, ref, rtol=1e-5, atol=1e-5), (out, ref)

    # second config: no alpha, gamma=0, sum reduction (exercises trace-time paths)
    out2 = focal_loss(logits, target, gamma=0.0, alpha=None,
                      ignore_index=ignore_index, size_average=False)
    out2 = jax.block_until_ready(out2)
    ref2 = _focal_loss_ref(logits, target, 0.0,
                           jnp.ones((num_label,), jnp.float32),
                           ignore_index, size_average=False)
    assert jnp.allclose(out2, ref2, rtol=1e-5, atol=1e-5), (out2, ref2)

    # third config: ragged row count (N=21, not a multiple of the 8-row tile),
    # explicit 2-core grid, scalar (binary) alpha, fractional gamma -> exercises
    # the clamped index_map, in-kernel row masking and the general pow path.
    b3, s3, c3 = 3, 7, 2
    logits3 = jax.random.normal(k_logits3, (b3, s3, c3), jnp.float32)
    target3 = jax.random.randint(k_target3, (b3, s3), 0, c3, jnp.int32)
    target3 = target3.at[0, 1].set(ignore_index)
    out3 = focal_loss(logits3, target3, gamma=2.5, alpha=0.25,
                      ignore_index=ignore_index, size_average=True,
                      tile_n=8, num_cores=2)
    out3 = jax.block_until_ready(out3)
    ref3 = _focal_loss_ref(logits3, target3, 2.5,
                           jnp.array([0.25, 0.75], jnp.float32),
                           ignore_index, size_average=True)
    assert jnp.allclose(out3, ref3, rtol=1e-5, atol=1e-5), (out3, ref3)

    print("KERNEL_OK")
</pallas_src>

<mosaic_0001>
module attributes {stable_mosaic.version = 11 : i64} {
  func.func @_focal_loss_kernel(%arg0: i32, %arg1: i32, %arg2: memref<16x32xf32, #tpu.memory_space<vmem>>, %arg3: memref<16x1xi32, #tpu.memory_space<vmem>>, %arg4: memref<16x1xf32, #tpu.memory_space<vmem>>, %arg5: memref<1x8x128xf32, #tpu.memory_space<vmem>>, %arg6: memref<1x1xf32, #tpu.memory_space<vmem>>) attributes {dimension_semantics = [#tpu.dimension_semantics<parallel>, #tpu.dimension_semantics<arbitrary>], iteration_bounds = array<i64: 1, 1>, scalar_prefetch = 0 : i64, scratch_operands = 1 : i64, tpu.core_type = #tpu.core_type<tc>, window_params = [{transform_indices = @transform_0, window_bounds = array<i64: 16, 32>}, {transform_indices = @transform_1, window_bounds = array<i64: 16, 1>}, {transform_indices = @transform_2, window_bounds = array<i64: 16, 1>}, {transform_indices = @transform_3, window_bounds = array<i64: 1, 8, 128>}]} {
    %c0_i32 = arith.constant 0 : i32
    %0 = arith.cmpi eq, %arg1, %c0_i32 : i32
    %1 = arith.extui %0 : i1 to i32
    %c0_i32_0 = arith.constant 0 : i32
    %2 = arith.cmpi ne, %1, %c0_i32_0 : i32
    scf.if %2 {
      %cst_20 = arith.constant 0.000000e+00 : f32
      %51 = vector.broadcast %cst_20 : f32 to vector<1x1xf32>
      %c0_21 = arith.constant 0 : index
      %c0_22 = arith.constant 0 : index
      %52 = vector.load %arg6[%c0_21, %c0_22] : memref<1x1xf32, #tpu.memory_space<vmem>>, vector<1x1xf32>
      tpu.vector_store %arg6[%c0_21, %c0_22], %51 {strides = array<i32>} : memref<1x1xf32, #tpu.memory_space<vmem>>, vector<1x1xf32>,
    } else {
    }
    %c0 = arith.constant 0 : index
    %c0_1 = arith.constant 0 : index
    %3 = vector.load %arg2[%c0, %c0_1] : memref<16x32xf32, #tpu.memory_space<vmem>>, vector<16x32xf32>
    %c0_2 = arith.constant 0 : index
    %c0_3 = arith.constant 0 : index
    %4 = vector.load %arg3[%c0_2, %c0_3] : memref<16x1xi32, #tpu.memory_space<vmem>>, vector<16x1xi32>
    %c0_4 = arith.constant 0 : index
    %c0_5 = arith.constant 0 : index
    %5 = vector.load %arg4[%c0_4, %c0_5] : memref<16x1xf32, #tpu.memory_space<vmem>>, vector<16x1xf32>
    %c1_i32 = arith.constant 1 : i32
    %6 = arith.muli %arg0, %c1_i32 : i32
    %7 = arith.addi %6, %arg1 : i32
    %c16_i32 = arith.constant 16 : i32
    %8 = arith.muli %7, %c16_i32 : i32
    %9 = tpu.iota {dimensions = array<i32: 0>} : vector<16x1xi32>
    %10 = vector.broadcast %8 : i32 to vector<16x1xi32>
    %11 = arith.addi %10, %9 : vector<16x1xi32>
    %c16_i32_6 = arith.constant 16 : i32
    %12 = vector.broadcast %c16_i32_6 : i32 to vector<16x1xi32>
    %13 = arith.cmpi slt, %11, %12 : vector<16x1xi32>
    %cst = arith.constant dense<0xFF800000> : vector<16xf32>
    %14 = vector.multi_reduction <maximumf>, %3, %cst [1] : vector<16x32xf32> to vector<16xf32>
    %15 = vector.shape_cast %14 : vector<16xf32> to vector<16x1xf32>
    %16 = vector.broadcast %15 : vector<16x1xf32> to vector<16x32xf32>
    %17 = arith.subf %3, %16 : vector<16x32xf32>
    %18 = math.exp %17 : vector<16x32xf32>
    %cst_7 = arith.constant dense<0.000000e+00> : vector<16xf32>
    %19 = vector.multi_reduction <add>, %18, %cst_7 [1] : vector<16x32xf32> to vector<16xf32>
    %20 = vector.shape_cast %19 : vector<16xf32> to vector<16x1xf32>
    %21 = math.log %20 : vector<16x1xf32>
    %22 = tpu.iota {dimensions = array<i32: 1>} : vector<16x32xi32>
    %23 = vector.broadcast %4 : vector<16x1xi32> to vector<16x32xi32>
    %24 = arith.cmpi eq, %22, %23 : vector<16x32xi32>
    %cst_8 = arith.constant 0.000000e+00 : f32
    %25 = vector.broadcast %cst_8 : f32 to vector<16x32xf32>
    %26 = arith.select %24, %17, %25 : vector<16x32xi1>, vector<16x32xf32>
    %cst_9 = arith.constant dense<0.000000e+00> : vector<16xf32>
    %27 = vector.multi_reduction <add>, %26, %cst_9 [1] : vector<16x32xf32> to vector<16xf32>
    %28 = vector.shape_cast %27 : vector<16xf32> to vector<16x1xf32>
    %29 = arith.subf %28, %21 : vector<16x1xf32>
    %30 = math.exp %29 : vector<16x1xf32>
    %cst_10 = arith.constant 1.000000e+00 : f32
    %31 = vector.broadcast %cst_10 : f32 to vector<16x1xf32>
    %32 = arith.subf %31, %30 : vector<16x1xf32>
    %33 = arith.mulf %32, %32 : vector<16x1xf32>
    %cst_11 = arith.constant 0.000000e+00 : f32
    %34 = vector.broadcast %cst_11 : f32 to vector<16x1xf32>
    %35 = arith.subf %34, %33 : vector<16x1xf32>
    %36 = arith.mulf %35, %29 : vector<16x1xf32>
    %37 = arith.mulf %36, %5 : vector<16x1xf32>
    %cst_12 = arith.constant 0.000000e+00 : f32
    %38 = vector.broadcast %cst_12 : f32 to vector<16x1xf32>
    %39 = arith.select %13, %37, %38 : vector<16x1xi1>, vector<16x1xf32>
    %c0_13 = arith.constant 0 : index
    %c0_14 = arith.constant 0 : index
    %40 = vector.load %arg6[%c0_13, %c0_14] : memref<1x1xf32, #tpu.memory_space<vmem>>, vector<1x1xf32>
    %41 = vector.shape_cast %39 : vector<16x1xf32> to vector<1x16x1xf32>
    %cst_15 = arith.constant dense<0.000000e+00> : vector<1xf32>
    %42 = vector.multi_reduction <add>, %41, %cst_15 [1, 2] : vector<1x16x1xf32> to vector<1xf32>
    %43 = vector.shape_cast %42 : vector<1xf32> to vector<1x1x1xf32>
    %44 = vector.extract %43[0, 0, 0] : f32 from vector<1x1x1xf32>
    %45 = vector.broadcast %44 : f32 to vector<1x1xf32>
    %46 = arith.addf %40, %45 : vector<1x1xf32>
    %c0_16 = arith.constant 0 : index
    %c0_17 = arith.constant 0 : index
    %47 = vector.load %arg6[%c0_16, %c0_17] : memref<1x1xf32, #tpu.memory_space<vmem>>, vector<1x1xf32>
    tpu.vector_store %arg6[%c0_16, %c0_17], %46 {strides = array<i32>} : memref<1x1xf32, #tpu.memory_space<vmem>>, vector<1x1xf32>,
    %c0_i32_18 = arith.constant 0 : i32
    %48 = arith.cmpi eq, %arg1, %c0_i32_18 : i32
    %49 = arith.extui %48 : i1 to i32
    %c0_i32_19 = arith.constant 0 : i32
    %50 = arith.cmpi ne, %49, %c0_i32_19 : i32
    scf.if %50 {
      %c0_20 = arith.constant 0 : index
      %c0_21 = arith.constant 0 : index
      %51 = vector.load %arg6[%c0_20, %c0_21] : memref<1x1xf32, #tpu.memory_space<vmem>>, vector<1x1xf32>
      %52 = vector.shape_cast %51 : vector<1x1xf32> to vector<1x1x1xf32>
      %53 = vector.shape_cast %52 : vector<1x1x1xf32> to vector<1x1x1xf32>
      %54 = vector.broadcast %53 : vector<1x1x1xf32> to vector<1x8x128xf32>
      %c0_22 = arith.constant 0 : index
      %c0_23 = arith.constant 0 : index
      %c0_24 = arith.constant 0 : index
      %55 = vector.load %arg5[%c0_22, %c0_23, %c0_24] : memref<1x8x128xf32, #tpu.memory_space<vmem>>, vector<1x8x128xf32>
      tpu.vector_store %arg5[%c0_22, %c0_23, %c0_24], %54 {strides = array<i32>} : memref<1x8x128xf32, #tpu.memory_space<vmem>>, vector<1x8x128xf32>,
    } else {
    }
    return
  }
  func.func @transform_0(%arg0: i32, %arg1: i32) -> (i32, i32) {
    %c1_i32 = arith.constant 1 : i32
    %0 = arith.muli %arg0, %c1_i32 : i32
    %1 = arith.addi %0, %arg1 : i32
    %c0_i32 = arith.constant 0 : i32
    %2 = arith.minsi %1, %c0_i32 : i32
    %c0_i32_0 = arith.constant 0 : i32
    %c0_i32_1 = arith.constant 0 : i32
    return %2, %c0_i32_0 : i32, i32
  }
  func.func @transform_1(%arg0: i32, %arg1: i32) -> (i32, i32) {
    %c1_i32 = arith.constant 1 : i32
    %0 = arith.muli %arg0, %c1_i32 : i32
    %1 = arith.addi %0, %arg1 : i32
    %c0_i32 = arith.constant 0 : i32
    %2 = arith.minsi %1, %c0_i32 : i32
    %c0_i32_0 = arith.constant 0 : i32
    %c0_i32_1 = arith.constant 0 : i32
    return %2, %c0_i32_0 : i32, i32
  }
  func.func @transform_2(%arg0: i32, %arg1: i32) -> (i32, i32) {
    %c1_i32 = arith.constant 1 : i32
    %0 = arith.muli %arg0, %c1_i32 : i32
    %1 = arith.addi %0, %arg1 : i32
    %c0_i32 = arith.constant 0 : i32
    %2 = arith.minsi %1, %c0_i32 : i32
    %c0_i32_0 = arith.constant 0 : i32
    %c0_i32_1 = arith.constant 0 : i32
    return %2, %c0_i32_0 : i32, i32
  }
  func.func @transform_3(%arg0: i32, %arg1: i32) -> (i32, i32, i32) {
    %c0_i32 = arith.constant 0 : i32
    %c0_i32_0 = arith.constant 0 : i32
    %c0_i32_1 = arith.constant 0 : i32
    return %arg0, %c0_i32, %c0_i32_0 : i32, i32, i32
  }
}

</mosaic_0001>

<llo_original>
// kernel: tpu_custom_call.1
$region0: #{tpu_custom_call.1}
  #allocation0 [shape = 'u32[]', space=smem, size = 0x4, offset = 0x4, fixed_abs, tag = 'smem constant byte address 0x4 - core index']
  #allocation1 [shape = 'u32[72,128]{1,0:T(1,128)}', space=vmem, size = 0x9000, scoped, tag = 'internal scratch']
  #allocation2 [shape = 'f32[1,1]{1,0:T(1,128)}', space=vmem, size = 0x200, scoped, tag = 'scratch operand']
  %s0 = inlined_call_operand.vmem [shape: f32[16,32], index: 0, kind: input, shape index: {}]
  %s1 = inlined_call_operand.vmem [shape: s32[16,1], index: 1, kind: input, shape index: {}]
  %s2 = inlined_call_operand.vmem [shape: f32[16,1], index: 2, kind: input, shape index: {}]
  %s3 = inlined_call_operand.hbm [shape: f32[1,8,128], index: 3, kind: output, shape index: {}]
  %s4 = sld [smem:[#allocation0]]
  $region30: #{tpu_custom_call.1} parent=0
    _
  %s6 = ssub.s32 1, %s4
  %s7 = scalar_select 0, %s6, %s4
  $region1: #{tpu_custom_call.1} parent=0
    #allocation3 [shape = 'u8[4096]{0}', space=vmem, size = 0x1000, scoped, tag = 'output window, operand 0, single buffered']
    #allocation4 [shape = 's32[1]{0}', space=sflag, size = 0x4, scoped, tag = 'scoped memory for tpu_custom_call.1']
    %8 = vsyncpa [#allocation4], 0
    // Predicated region
    $region2: #{tpu_custom_call.1} parent=1 // pred_check
      _
    $region3: #{tpu_custom_call.1} parent=1 // pred_check_branch
      %10 = sbr.rel (0) target = $region5
    $region4: #{tpu_custom_call.1} parent=1 // pred_region
      %s11 = sadd.s32 0, 0
      %p12 = scmp.lt.s32.totalorder %s11, 0
      %s13 = scalar_select %p12, %s11, 0
      %s14 = smul.u32 2, %s13
      %p15 = scmp.lt.s32.totalorder %s14, 1
      %s16 = scalar_select %p15, %s14, 1
      %s17 = smul.addr %s16, 8
      %s18 = scalar_lea.vmem %s0, %s17
      %s19 = sadd.s32 0, 0
      %p20 = scmp.lt.s32.totalorder %s19, 0
      %s21 = scalar_select %p20, %s19, 0
      %s22 = smul.u32 2, %s21
    $region5: #{tpu_custom_call.1} parent=1 // pred_fallthru
      _
    // Predicated region
    $region6: #{tpu_custom_call.1} parent=1 // pred_check
      _
    $region7: #{tpu_custom_call.1} parent=1 // pred_check_branch
      %24 = sbr.rel (0) target = $region9
    $region8: #{tpu_custom_call.1} parent=1 // pred_region
      %s25 = sadd.s32 0, 0
      %p26 = scmp.lt.s32.totalorder %s25, 0
      %s27 = scalar_select %p26, %s25, 0
      %s28 = smul.u32 2, %s27
      %p29 = scmp.lt.s32.totalorder %s28, 1
      %s30 = scalar_select %p29, %s28, 1
      %s31 = smul.addr %s30, 8
      %s32 = scalar_lea.vmem %s1, %s31
      %s33 = sadd.s32 0, 0
      %p34 = scmp.lt.s32.totalorder %s33, 0
      %s35 = scalar_select %p34, %s33, 0
      %s36 = smul.u32 2, %s35
    $region9: #{tpu_custom_call.1} parent=1 // pred_fallthru
      _
    // Predicated region
    $region10: #{tpu_custom_call.1} parent=1 // pred_check
      _
    $region11: #{tpu_custom_call.1} parent=1 // pred_check_branch
      %38 = sbr.rel (0) target = $region13
    $region12: #{tpu_custom_call.1} parent=1 // pred_region
      %s39 = sadd.s32 0, 0
      %p40 = scmp.lt.s32.totalorder %s39, 0
      %s41 = scalar_select %p40, %s39, 0
      %s42 = smul.u32 2, %s41
      %p43 = scmp.lt.s32.totalorder %s42, 1
      %s44 = scalar_select %p43, %s42, 1
      %s45 = smul.addr %s44, 8
      %s46 = scalar_lea.vmem %s2, %s45
      %s47 = sadd.s32 0, 0
      %p48 = scmp.lt.s32.totalorder %s47, 0
      %s49 = scalar_select %p48, %s47, 0
      %s50 = smul.u32 2, %s49
    $region13: #{tpu_custom_call.1} parent=1 // pred_fallthru
      _
    %s51 = sadd.s32 0, 0
    %p52 = scmp.lt.s32.totalorder %s51, 0
    %s53 = scalar_select %p52, %s51, 0
    %s54 = smul.u32 2, %s53
    %p55 = scmp.lt.s32.totalorder %s54, 1
    %s56 = scalar_select %p55, %s54, 1
    %s57 = smul.addr %s56, 8
    %s58 = scalar_lea.vmem %s0, %s57
    %s59 = sadd.s32 0, 0
    %p60 = scmp.lt.s32.totalorder %s59, 0
    %s61 = scalar_select %p60, %s59, 0
    %s62 = smul.u32 2, %s61
    %p63 = scmp.lt.s32.totalorder %s62, 1
    %s64 = scalar_select %p63, %s62, 1
    %s65 = smul.addr %s64, 8
    %s66 = scalar_lea.vmem %s1, %s65
    %s67 = sadd.s32 0, 0
    %p68 = scmp.lt.s32.totalorder %s67, 0
    %s69 = scalar_select %p68, %s67, 0
    %s70 = smul.u32 2, %s69
    %p71 = scmp.lt.s32.totalorder %s70, 1
    %s72 = scalar_select %p71, %s70, 1
    %s73 = smul.addr %s72, 8
    %s74 = scalar_lea.vmem %s2, %s73
    %s75 = sadd.s32 0, 0
    %p76 = scmp.lt.s32.totalorder %s75, 0
    %s77 = scalar_select %p76, %s75, 0
    %s78 = smul.u32 2, %s77
    %p79 = scmp.lt.s32.totalorder %s78, 1
    %s80 = scalar_select %p79, %s78, 1
    %s81 = smul.addr %s80, 8
    %s82 = scalar_lea.vmem %s0, %s81
    %s83 = sadd.s32 0, 0
    %p84 = scmp.lt.s32.totalorder %s83, 0
    %s85 = scalar_select %p84, %s83, 0
    %s86 = smul.u32 2, %s85
    %s87 = sadd.s32 0, 0
    %p88 = scmp.lt.s32.totalorder %s87, 0
    %s89 = scalar_select %p88, %s87, 0
    %s90 = smul.u32 2, %s89
    %p91 = scmp.lt.s32.totalorder %s90, 1
    %s92 = scalar_select %p91, %s90, 1
    %s93 = smul.addr %s92, 8
    %s94 = scalar_lea.vmem %s1, %s93
    %s95 = sadd.s32 0, 0
    %p96 = scmp.lt.s32.totalorder %s95, 0
    %s97 = scalar_select %p96, %s95, 0
    %s98 = smul.u32 2, %s97
    %s99 = sadd.s32 0, 0
    %p100 = scmp.lt.s32.totalorder %s99, 0
    %s101 = scalar_select %p100, %s99, 0
    %s102 = smul.u32 2, %s101
    %p103 = scmp.lt.s32.totalorder %s102, 1
    %s104 = scalar_select %p103, %s102, 1
    %s105 = smul.addr %s104, 8
    %s106 = scalar_lea.vmem %s2, %s105
    %s107 = sadd.s32 0, 0
    %p108 = scmp.lt.s32.totalorder %s107, 0
    %s109 = scalar_select %p108, %s107, 0
    %s110 = smul.u32 2, %s109
    %p111 = scmp.eq.s32.totalorder 0, 0
    // Predicated region
    $region14: #{tpu_custom_call.1} parent=1 // pred_check
      %p112 = pneg %p111
    $region15: #{tpu_custom_call.1} parent=1 // pred_check_branch
      %114 = sbr.rel (%p112) target = $region17
    $region16: #{tpu_custom_call.1} parent=1 // pred_region
      %vm115 = vcmask 0
      %116 = vst.msk [vmem:[#allocation2] sm:$0x1] %vm115, 0.0
    $region17: #{tpu_custom_call.1} parent=1 // pred_fallthru
      _
    %v117 = vld [vmem:[%s82] sm:$0xff]
    %v118 = vld [vmem:[%s82 + $0x8] sm:$0xff]
    %v119 = vld [vmem:[%s94] sm:$0xff]
    %v120 = vld [vmem:[%s94 + $0x8] sm:$0xff]
    %v121 = vld [vmem:[%s106] sm:$0xff]
    %v122 = vld [vmem:[%s106 + $0x8] sm:$0xff]
    %s123 = sadd.s32 0, 0
    %s124 = smul.u32 %s123, 16
    %v125 = vlaneseq
    %v126 = vshrl.u32 %v125, 7
    %v127 = vadd.s32 %v126, 8
    %v128 = vstv %s124
    %v129 = vadd.s32 %v128, %v126
    %v130 = vadd.s32 %v128, %v127
    %vm131 = vcmp.lt.s32.totalorder %v129, 16
    %vm132 = vcmp.lt.s32.totalorder %v130, 16
    %vm133 = vcmask 261120
    %v134 = vsel %vm133, %v117, -inf
    %135 = vmax.xlane.f32.xlu0 %v134
    %v136 = vpop.xlane.xlu0 %135
    %v137 = vsel %vm133, %v118, -inf
    %138 = vmax.xlane.f32.xlu0 %v137
    %v139 = vpop.xlane.xlu0 %138
    %v140 = vsub.f32 %v117, %v136
    %v141 = vsub.f32 %v118, %v139
    %v142 = vmul.f32 %v140, 1.442695
    %v143 = vpow.pop %v142
    %v144 = vmul.f32 %v141, 1.442695
    %v145 = vpow.pop %v144
    %v146 = vsel %vm133, %v143, 0.0
    %147 = vadd.xlane.f32.xlu0 %v146
    %v148 = vpop.xlane.xlu0 %147
    %v149 = vsel %vm133, %v145, 0.0
    %150 = vadd.xlane.f32.xlu0 %v149
    %v151 = vpop.xlane.xlu0 %150
    %v152 = vlog2.pop %v148
    %v153 = vmul.f32 %v152, 0.6931472
    %v154 = vlog2.pop %v151
    %v155 = vmul.f32 %v154, 0.6931472
    %v156 = vlaneseq
    %v157 = vand.u32 %v156, 127
    %158 = vset.pattern.permute.xlu0 0
    %159 = vperm.xlu0 %158, %v119
    %v160 = vpop.permute.xlu0 %159
    %161 = vset.pattern.permute.xlu0 0
    %162 = vperm.xlu0 %161, %v120
    %v163 = vpop.permute.xlu0 %162
    %vm164 = vcmp.eq.s32.totalorder %v157, %v160
    %vm165 = vcmp.eq.s32.totalorder %v157, %v163
    %v166 = vsel %vm164, %v140, 0.0
    %v167 = vsel %vm165, %v141, 0.0
    %v168 = vsel %vm133, %v166, 0.0
    %169 = vadd.xlane.f32.xlu0 %v168
    %v170 = vpop.xlane.xlu0 %169
    %v171 = vsel %vm133, %v167, 0.0
    %172 = vadd.xlane.f32.xlu0 %v171
    %v173 = vpop.xlane.xlu0 %172
    %v174 = vsub.f32 %v170, %v153
    %v175 = vsub.f32 %v173, %v155
    %v176 = vmul.f32 %v174, 1.442695
    %v177 = vpow.pop %v176
    %v178 = vmul.f32 %v175, 1.442695
    %v179 = vpow.pop %v178
    %v180 = vsub.f32 1.0, %v177
    %v181 = vsub.f32 1.0, %v179
    %v182 = vmul.f32 %v180, %v180
    %v183 = vmul.f32 %v181, %v181
    %v184 = vsub.f32 0.0, %v182
    %v185 = vsub.f32 0.0, %v183
    %v186 = vmul.f32 %v184, %v174
    %v187 = vmul.f32 %v185, %v175
    %v188 = vmul.f32 %v186, %v121
    %v189 = vmul.f32 %v187, %v122
    %v190 = vsel %vm131, %v188, 0.0
    %v191 = vsel %vm132, %v189, 0.0
    %v192 = vld [vmem:[#allocation2] sm:$0x1]
    %vm193 = vcmask 7168
    %v194 = vsel %vm193, %v190, 0.0
    %v195 = vsel %vm193, %v191, 0.0
    %v196 = vadd.f32 %v194, %v195
    %197 = vadd.xlane.f32.xlu0 %v196
    %v198 = vpop.xlane.xlu0 %197
    %v199 = vrot.slane %v198, 4
    %v200 = vadd.f32 %v198, %v199
    %v201 = vrot.slane %v200, 2
    %v202 = vadd.f32 %v200, %v201
    %v203 = vrot.slane %v202, 1
    %v204 = vadd.f32 %v202, %v203
    %s205 = vtos %v204
    %v206 = vstv %s205
    %v207 = vadd.f32 %v192, %v206
    %vm208 = vcmask 0
    %209 = vst.msk [vmem:[#allocation2] sm:$0x1] %vm208, %v207
    // Predicated region
    $region18: #{tpu_custom_call.1} parent=1 // pred_check
      %p210 = pneg %p111
    $region19: #{tpu_custom_call.1} parent=1 // pred_check_branch
      %212 = sbr.rel (%p210) target = $region21
    $region20: #{tpu_custom_call.1} parent=1 // pred_region
      %v213 = vld [vmem:[#allocation2] sm:$0x1]
      %v215 = vperm.slane %v213, 0
      %216 = vset.pattern.permute.xlu0 0
      %217 = vperm.xlu0 %216, %v215
      %v218 = vpop.permute.xlu0 %217
      %220 = vst [vmem:[#allocation3] sm:$0xff] %v218
    $region21: #{tpu_custom_call.1} parent=1 // pred_fallthru
      _
    // Predicated region
    $region22: #{tpu_custom_call.1} parent=1 // pred_check
      _
    $region23: #{tpu_custom_call.1} parent=1 // pred_check_branch
      %222 = sbr.rel (0) target = $region25
    $region24: #{tpu_custom_call.1} parent=1 // pred_region
      %224 = vsyncadd [#allocation4], 0
      %s226 = sshll.u32 [#allocation3], 4
      %s227 = int_to_ptr.vmem [resolvable:$true] %s226
      %s228 = sshll.u32 %s3, 4
      %s229 = int_to_ptr.hbm [resolvable:$true] %s228
      %231 = dma.vmem_to_hbm [thread:$0]  %s227, 128, %s229, [#allocation4]
    $region25: #{tpu_custom_call.1} parent=1 // pred_fallthru
      _
    // Predicated region
    $region26: #{tpu_custom_call.1} parent=1 // pred_check
      _
    $region27: #{tpu_custom_call.1} parent=1 // pred_check_branch
      %233 = sbr.rel (0) target = $region29
    $region28: #{tpu_custom_call.1} parent=1 // pred_region
      %235 = dma.done [#allocation4], 128
    $region29: #{tpu_custom_call.1} parent=1 // pred_fallthru
      _
    %236 = vsyncpa [#allocation4], 1

</llo_original>
